<compile_context>
chip_gen: v5e
topology: v5e:2x2
jax: 0.10.0
libtpu: 0.0.40
codegen_flags: <defaults>
</compile_context>

<pallas_src>
import jax
import jax.numpy as jnp
from jax.experimental import pallas as pl
from jax.experimental.pallas import tpu as pltpu

LANES = 512  # lane-dense slab width (multiple of 128 -> unmasked full-width stores)


def _gaussian_kernel(params_ref, x_ref, o_ref):
    # params_ref (SMEM, f32): [mean, neg_inv_var, bias], neg_inv_var = -1/(std+0.001)^2
    mean = params_ref[0]
    neg_inv_var = params_ref[1]
    bias = params_ref[2]
    x = x_ref[...]
    d = x - mean                                  # promotes to f32 (params are f32)
    o_ref[...] = (jnp.exp(d * d * neg_inv_var) + bias).astype(o_ref.dtype)


def _round_up(a, b):
    return -(-a // b) * b


def gaussian_activation(x, mean, std, bias, gain=None):
    """Elementwise Gaussian activation: exp(-((x - mean)^2 / (std + 0.001)^2)) + bias.

    `gain` is accepted for parity with the nn.Module but is unused in forward.
    Works for any input shape (flattened internally).
    """
    orig_shape = x.shape
    orig_dtype = x.dtype
    total = x.size

    # Packed sub-32-bit dtypes need larger minimum sublane tiles (bf16: 16, int8: 32).
    itemsize = jnp.dtype(orig_dtype).itemsize
    sub_min = {4: 8, 2: 16, 1: 32}.get(itemsize, 8)

    # Lane-dense 2D slab (rows, LANES).
    n_rows = -(-total // LANES)  # cdiv

    # ~2 MiB f32 block (1024 x 512 x 4B). Double-buffered input + output
    # => ~8 MiB VMEM, comfortably inside the scoped default on v5e/v6e/v7x.
    target_rows = 1024
    row_tile = min(target_rows, _round_up(n_rows, sub_min))
    n_rows_pad = _round_up(n_rows, row_tile)
    pad = n_rows_pad * LANES - total

    x_flat = x.reshape(-1)
    if pad > 0:
        # Only pay the extra HBM pass when the size is actually ragged.
        x_flat = jnp.pad(x_flat, (0, pad))
    x_slab = x_flat.reshape(n_rows_pad, LANES)

    # Hoist all scalar math out of the kernel: pass [mean, -1/(std+0.001)^2, bias].
    mean = jnp.asarray(mean, jnp.float32).reshape(())
    std = jnp.asarray(std, jnp.float32).reshape(())
    bias = jnp.asarray(bias, jnp.float32).reshape(())
    neg_inv_var = -1.0 / ((std + 0.001) ** 2)
    params = jnp.stack([mean, neg_inv_var, bias])

    grid = (n_rows_pad // row_tile,)

    out_slab = pl.pallas_call(
        _gaussian_kernel,
        out_shape=jax.ShapeDtypeStruct((n_rows_pad, LANES), orig_dtype),
        grid=grid,
        in_specs=[
            pl.BlockSpec(memory_space=pltpu.SMEM),               # scalar params
            pl.BlockSpec((row_tile, LANES), lambda i: (i, 0)),   # x tile
        ],
        out_specs=pl.BlockSpec((row_tile, LANES), lambda i: (i, 0)),
        compiler_params=pltpu.CompilerParams(
            dimension_semantics=("parallel",)),
    )(params, x_slab)

    out_flat = out_slab.reshape(-1)
    if pad > 0:
        out_flat = out_flat[:total]
    return out_flat.reshape(orig_shape)


if __name__ == "__main__":
    key = jax.random.PRNGKey(0)
    B, C, H, W = 2, 4, 16, 16
    x = jax.random.normal(key, (B, C, H, W), dtype=jnp.float32)

    # Deterministic parameter init matching nn.Module __init__:
    gain = jnp.ones((1,), jnp.float32)   # unused in forward (kept for parity)
    bias = -jnp.ones((1,), jnp.float32)
    mean = jnp.zeros((1,), jnp.float32)
    std = jnp.ones((1,), jnp.float32)

    out = gaussian_activation(x, mean[0], std[0], bias[0], gain)
    out = jax.block_until_ready(out)

    # Reference check in plain JAX.
    ref = jnp.exp(-((x - mean[0]) ** 2 / (std[0] + 0.001) ** 2)) + bias[0]
    assert out.shape == (B, C, H, W)
    assert jnp.allclose(out, ref, atol=1e-5, rtol=1e-5), "mismatch vs reference"

    print("KERNEL_OK")
</pallas_src>

<mosaic_0001>
module attributes {stable_mosaic.version = 11 : i64} {
  func.func @_gaussian_kernel(%arg0: i32, %arg1: memref<3xf32, #tpu.memory_space<smem>>, %arg2: memref<8x512xf32, #tpu.memory_space<vmem>>, %arg3: memref<8x512xf32, #tpu.memory_space<vmem>>) attributes {dimension_semantics = [#tpu.dimension_semantics<parallel>], iteration_bounds = array<i64: 1>, scalar_prefetch = 0 : i64, scratch_operands = 0 : i64, tpu.core_type = #tpu.core_type<tc>, window_params = [{transform_indices = @transform_0, window_bounds = array<i64: 3>}, {transform_indices = @transform_1, window_bounds = array<i64: 8, 512>}, {transform_indices = @transform_2, window_bounds = array<i64: 8, 512>}]} {
    %c0 = arith.constant 0 : index
    %0 = memref.load %arg1[%c0] : memref<3xf32, #tpu.memory_space<smem>>
    %c1 = arith.constant 1 : index
    %1 = memref.load %arg1[%c1] : memref<3xf32, #tpu.memory_space<smem>>
    %c2 = arith.constant 2 : index
    %2 = memref.load %arg1[%c2] : memref<3xf32, #tpu.memory_space<smem>>
    %c0_0 = arith.constant 0 : index
    %c0_1 = arith.constant 0 : index
    %3 = vector.load %arg2[%c0_0, %c0_1] : memref<8x512xf32, #tpu.memory_space<vmem>>, vector<8x512xf32>
    %4 = vector.broadcast %0 : f32 to vector<8x512xf32>
    %5 = arith.subf %3, %4 : vector<8x512xf32>
    %6 = arith.mulf %5, %5 : vector<8x512xf32>
    %7 = vector.broadcast %1 : f32 to vector<8x512xf32>
    %8 = arith.mulf %6, %7 : vector<8x512xf32>
    %9 = math.exp %8 : vector<8x512xf32>
    %10 = vector.broadcast %2 : f32 to vector<8x512xf32>
    %11 = arith.addf %9, %10 : vector<8x512xf32>
    %c0_2 = arith.constant 0 : index
    %c0_3 = arith.constant 0 : index
    %12 = vector.load %arg3[%c0_2, %c0_3] : memref<8x512xf32, #tpu.memory_space<vmem>>, vector<8x512xf32>
    tpu.vector_store %arg3[%c0_2, %c0_3], %11 {strides = array<i32>} : memref<8x512xf32, #tpu.memory_space<vmem>>, vector<8x512xf32>,
    return
  }
  func.func @transform_0(%arg0: i32) -> i32 {
    %c0_i32 = arith.constant 0 : i32
    %c0_i32_0 = arith.constant 0 : i32
    return %c0_i32 : i32
  }
  func.func @transform_1(%arg0: i32) -> (i32, i32) {
    %c0_i32 = arith.constant 0 : i32
    %c0_i32_0 = arith.constant 0 : i32
    return %arg0, %c0_i32 : i32, i32
  }
  func.func @transform_2(%arg0: i32) -> (i32, i32) {
    %c0_i32 = arith.constant 0 : i32
    %c0_i32_0 = arith.constant 0 : i32
    return %arg0, %c0_i32 : i32, i32
  }
}

</mosaic_0001>

<llo_original>
// kernel: tpu_custom_call.1
$region0: #{tpu_custom_call.1}
  #allocation0 [shape = 'u32[]', space=smem, size = 0x4, offset = 0x4, fixed_abs, tag = 'smem constant byte address 0x4 - core index']
  #allocation1 [shape = 'u32[72,128]{1,0:T(1,128)}', space=vmem, size = 0x9000, scoped, tag = 'internal scratch']
  %s0 = inlined_call_operand.hbm [shape: f32[3], index: 0, kind: input, shape index: {}]
  %s1 = inlined_call_operand.hbm [shape: f32[8,512], index: 1, kind: input, shape index: {}]
  %s2 = inlined_call_operand.hbm [shape: f32[8,512], index: 2, kind: output, shape index: {}]
  %s3 = sld [smem:[#allocation0]]
  $region26: #{tpu_custom_call.1} parent=0
    _
  %s5 = ssub.s32 1, %s3
  %s6 = scalar_select 0, %s5, %s3
  $region1: #{tpu_custom_call.1} parent=0
    #allocation2 [shape = 'u8[512]{0}', space=smem, size = 0x200, scoped, tag = 'input window, operand 0, single buffered']
    #allocation3 [shape = 's32[1]{0}', space=sflag, size = 0x4, scoped, tag = 'scoped memory for tpu_custom_call.1']
    #allocation4 [shape = 's32[1]{0}', space=sflag, size = 0x4, scoped, tag = 'scoped memory for tpu_custom_call.1']
    #allocation5 [shape = 's32[1]{0}', space=sflag, size = 0x4, scoped, tag = 'scoped memory for tpu_custom_call.1']
    #allocation6 [shape = 'u8[16384]{0}', space=vmem, size = 0x4000, scoped, tag = 'input window, operand 1, single buffered']
    #allocation7 [shape = 'u8[16384]{0}', space=vmem, size = 0x4000, scoped, tag = 'output window, operand 0, single buffered']
    %7 = vsyncpa [#allocation5], 0
    %8 = vsyncpa [#allocation3], 0
    %9 = vsyncpa [#allocation4], 0
    // Predicated region
    $region2: #{tpu_custom_call.1} parent=1 // pred_check
      _
    $region3: #{tpu_custom_call.1} parent=1 // pred_check_branch
      %11 = sbr.rel (0) target = $region5
    $region4: #{tpu_custom_call.1} parent=1 // pred_region
      %13 = vsyncadd [#allocation5], 0
      %s15 = sshll.u32 %s0, 4
      %s16 = int_to_ptr.hbm [resolvable:$true] %s15
      %18 = dma.hbm_to_smem %s16, 16, [#allocation2], [#allocation5]
    $region5: #{tpu_custom_call.1} parent=1 // pred_fallthru
      _
    // Predicated region
    $region6: #{tpu_custom_call.1} parent=1 // pred_check
      _
    $region7: #{tpu_custom_call.1} parent=1 // pred_check_branch
      %20 = sbr.rel (0) target = $region9
    $region8: #{tpu_custom_call.1} parent=1 // pred_region
      %22 = vsyncadd [#allocation3], 0
      %s24 = sshll.u32 %s1, 4
      %s25 = int_to_ptr.hbm [resolvable:$true] %s24
      %s26 = sshll.u32 [#allocation6], 4
      %s27 = int_to_ptr.vmem [resolvable:$true] %s26
      %29 = dma.hbm_to_vmem [thread:$0]  %s25, 512, %s27, [#allocation3]
    $region9: #{tpu_custom_call.1} parent=1 // pred_fallthru
      _
    // Predicated region
    $region10: #{tpu_custom_call.1} parent=1 // pred_check
      _
    $region11: #{tpu_custom_call.1} parent=1 // pred_check_branch
      %31 = sbr.rel (0) target = $region13
    $region12: #{tpu_custom_call.1} parent=1 // pred_region
      %33 = dma.done [#allocation5], 16
    $region13: #{tpu_custom_call.1} parent=1 // pred_fallthru
      _
    // Predicated region
    $region14: #{tpu_custom_call.1} parent=1 // pred_check
      _
    $region15: #{tpu_custom_call.1} parent=1 // pred_check_branch
      %35 = sbr.rel (0) target = $region17
    $region16: #{tpu_custom_call.1} parent=1 // pred_region
      %37 = dma.done [#allocation3], 512
    $region17: #{tpu_custom_call.1} parent=1 // pred_fallthru
      _
    %38 = sfence
    %s39 = sld [smem:[#allocation2]]
    %s40 = sld [smem:[#allocation2 + $0x1]]
    %s41 = sld [smem:[#allocation2 + $0x2]]
    %v42 = vld [vmem:[#allocation6] sm:$0xff]
    %v43 = vld [vmem:[#allocation6 + $0x8] sm:$0xff]
    %v44 = vld [vmem:[#allocation6 + $0x10] sm:$0xff]
    %v45 = vld [vmem:[#allocation6 + $0x18] sm:$0xff]
    %v46 = vstv %s39
    %v47 = vsub.f32 %v42, %v46
    %v48 = vsub.f32 %v43, %v46
    %v49 = vsub.f32 %v44, %v46
    %v50 = vsub.f32 %v45, %v46
    %v51 = vmul.f32 %v47, %v47
    %v52 = vmul.f32 %v48, %v48
    %v53 = vmul.f32 %v49, %v49
    %v54 = vmul.f32 %v50, %v50
    %v55 = vstv %s40
    %v56 = vmul.f32 %v51, %v55
    %v57 = vmul.f32 %v52, %v55
    %v58 = vmul.f32 %v53, %v55
    %v59 = vmul.f32 %v54, %v55
    %v60 = vmul.f32 %v56, 1.442695
    %v61 = vpow.pop %v60
    %v62 = vmul.f32 %v57, 1.442695
    %v63 = vpow.pop %v62
    %v64 = vmul.f32 %v58, 1.442695
    %v65 = vpow.pop %v64
    %v66 = vmul.f32 %v59, 1.442695
    %v67 = vpow.pop %v66
    %v68 = vstv %s41
    %v69 = vadd.f32 %v61, %v68
    %v70 = vadd.f32 %v63, %v68
    %v71 = vadd.f32 %v65, %v68
    %v72 = vadd.f32 %v67, %v68
    %73 = vst [vmem:[#allocation7] sm:$0xff] %v69
    %74 = vst [vmem:[#allocation7 + $0x8] sm:$0xff] %v70
    %75 = vst [vmem:[#allocation7 + $0x10] sm:$0xff] %v71
    %76 = vst [vmem:[#allocation7 + $0x18] sm:$0xff] %v72
    // Predicated region
    $region18: #{tpu_custom_call.1} parent=1 // pred_check
      _
    $region19: #{tpu_custom_call.1} parent=1 // pred_check_branch
      %78 = sbr.rel (0) target = $region21
    $region20: #{tpu_custom_call.1} parent=1 // pred_region
      %80 = vsyncadd [#allocation4], 0
      %s82 = sshll.u32 [#allocation7], 4
      %s83 = int_to_ptr.vmem [resolvable:$true] %s82
      %s84 = sshll.u32 %s2, 4
      %s85 = int_to_ptr.hbm [resolvable:$true] %s84
      %87 = dma.vmem_to_hbm [thread:$0]  %s83, 512, %s85, [#allocation4]
    $region21: #{tpu_custom_call.1} parent=1 // pred_fallthru
      _
    // Predicated region
    $region22: #{tpu_custom_call.1} parent=1 // pred_check
      _
    $region23: #{tpu_custom_call.1} parent=1 // pred_check_branch
      %89 = sbr.rel (0) target = $region25
    $region24: #{tpu_custom_call.1} parent=1 // pred_region
      %91 = dma.done [#allocation4], 512
    $region25: #{tpu_custom_call.1} parent=1 // pred_fallthru
      _
    %92 = vsyncpa [#allocation3], 1
    %93 = vsyncpa [#allocation4], 1
    %94 = vsyncpa [#allocation5], 1

</llo_original>
